<compile_context>
chip_gen: v7x
topology: tpu7x:2x2x1
jax: 0.10.0
libtpu: 0.0.40
codegen_flags: <defaults>
</compile_context>

<pallas_src>
import jax
import jax.numpy as jnp
from jax.experimental import pallas as pl
from jax.experimental.pallas import tpu as pltpu


def residual_block_kernel(x_ref, w1_ref, b1_ref, w2_ref, b2_ref, out_ref, pad_scr):
    """One grid step == one batch tile of NB images (folded NHWC layout).

    x_ref   : (NB, H, W*C)   f32   input (skip path read from the same ref)
    w1/w2   : (3*W*C, W*C)   bf16  banded conv weights (built in wrapper)
    b1/b2   : (1, W*C)       f32   bias tiled across W
    out_ref : (NB, H, W*C)   f32
    pad_scr : (NB, H+2, W*C) f32   activation scratch with 2-row H halo
    """
    NB, Hp, WC = pad_scr.shape
    H = Hp - 2

    x = x_ref[...]                                     # (NB, H, WC)

    # Zero only the two halo rows per image; the interior is overwritten below.
    zero_rows = jnp.zeros((NB, 1, WC), jnp.float32)
    pad_scr[:, 0:1, :] = zero_rows
    pad_scr[:, Hp - 1:Hp, :] = zero_rows

    def conv3x3(w_ref, b_ref):
        # Patch slab over the three dy taps: (NB, H, 3*W*C).  The dx taps and
        # the W-boundary zero padding live inside the banded weight matrix, so
        # the whole 3x3 conv over the batch tile is a single MXU matmul.
        patches = jnp.concatenate(
            [pad_scr[:, dy:dy + H, :] for dy in range(3)], axis=-1)
        patches = patches.reshape(NB * H, 3 * WC)      # free: H % 8 == 0
        acc = jnp.dot(patches.astype(w_ref.dtype), w_ref[...],
                      preferred_element_type=jnp.float32)   # (NB*H, WC)
        return acc + b_ref[...]

    pad_scr[:, 1:H + 1, :] = x
    y = jnp.maximum(conv3x3(w1_ref, b1_ref), 0.0)      # conv1 + ReLU

    pad_scr[:, 1:H + 1, :] = y.reshape(NB, H, WC)      # halo rows still zero
    y = conv3x3(w2_ref, b2_ref)                        # conv2

    out_ref[...] = (x + y.reshape(NB, H, WC)).astype(out_ref.dtype)  # residual


def _banded_weight(w_hwio, W, dtype):
    """Build the (3*W*C, W*C) lowered-conv matrix from (3,3,C,C) HWIO weights.

    T[(dy*W + w_in)*C + ci, w_out*C + co] = w[dy, w_in - w_out + 1, ci, co]
    for |w_in - w_out| <= 1, else 0 (this encodes SAME padding along W).
    """
    C = w_hwio.shape[2]
    wi = jnp.arange(W)[:, None]                 # w_in
    wo = jnp.arange(W)[None, :]                 # w_out
    dx = wi - wo + 1                            # (W, W)
    valid = (dx >= 0) & (dx < 3)
    dxc = jnp.clip(dx, 0, 2)
    band = w_hwio[:, dxc]                       # (3, W_in, W_out, C, C)
    band = jnp.where(valid[None, :, :, None, None], band, 0.0)
    band = jnp.transpose(band, (0, 1, 3, 2, 4))  # (dy, w_in, ci, w_out, co)
    return band.reshape(3 * W * C, W * C).astype(dtype)


def _choose_batch_tile(N, H, WC, budget_bytes=8 * 1024 * 1024):
    """Largest batch tile whose f32 working set stays well inside VMEM."""
    per_img = (3 * H + 2) * WC * 4 * 2          # in + out (double-buffered) + scratch
    nb = max(1, min(N, budget_bytes // max(per_img, 1)))
    while N % nb:
        nb -= 1
    return nb


def residual_block(x_nchw, w1, b1, w2, b2, *, mxu_dtype=jnp.bfloat16,
                   batch_tile=None):
    """x_nchw: (N, C, H, W) f32.  w*: (3,3,C,C) HWIO.  b*: (C,)."""
    N, C, H, W = x_nchw.shape
    WC = W * C
    NB = batch_tile if batch_tile is not None else _choose_batch_tile(N, H, WC)

    # NCHW -> NHWC -> fold (W, C) into the lane dim (free row-major reshape).
    x = jnp.transpose(x_nchw, (0, 2, 3, 1)).reshape(N, H, WC)

    w1b = _banded_weight(w1, W, mxu_dtype)
    w2b = _banded_weight(w2, W, mxu_dtype)
    b1r = jnp.tile(b1, W).reshape(1, WC).astype(jnp.float32)
    b2r = jnp.tile(b2, W).reshape(1, WC).astype(jnp.float32)

    out = pl.pallas_call(
        residual_block_kernel,
        out_shape=jax.ShapeDtypeStruct((N, H, WC), x_nchw.dtype),
        grid_spec=pltpu.PrefetchScalarGridSpec(
            num_scalar_prefetch=0,
            grid=(N // NB,),
            in_specs=[
                pl.BlockSpec((NB, H, WC), lambda b: (b, 0, 0)),
                pl.BlockSpec((3 * WC, WC), lambda b: (0, 0)),
                pl.BlockSpec((1, WC), lambda b: (0, 0)),
                pl.BlockSpec((3 * WC, WC), lambda b: (0, 0)),
                pl.BlockSpec((1, WC), lambda b: (0, 0)),
            ],
            out_specs=pl.BlockSpec((NB, H, WC), lambda b: (b, 0, 0)),
            scratch_shapes=[pltpu.VMEM((NB, H + 2, WC), jnp.float32)],
        ),
        compiler_params=pltpu.CompilerParams(
            dimension_semantics=("parallel",),
            vmem_limit_bytes=32 * 1024 * 1024,
        ),
    )(x, w1b, b1r, w2b, b2r)

    # Unfold lanes back to (W, C), then NHWC -> NCHW.
    return jnp.transpose(out.reshape(N, H, W, C), (0, 3, 1, 2))


def ref_forward(x_nchw, w1, b1, w2, b2):
    """Pure-JAX reference matching nn.Conv2d(C, C, 3, 1, 1) semantics."""
    dn = ('NHWC', 'HWIO', 'NHWC')
    x = jnp.transpose(x_nchw, (0, 2, 3, 1))
    y = jax.lax.conv_general_dilated(x, w1, (1, 1), 'SAME',
                                     dimension_numbers=dn) + b1
    y = jnp.maximum(y, 0.0)
    y = jax.lax.conv_general_dilated(y, w2, (1, 1), 'SAME',
                                     dimension_numbers=dn) + b2
    return jnp.transpose(x + y, (0, 3, 1, 2))


if __name__ == "__main__":
    key = jax.random.PRNGKey(0)
    kx, k1, kb1, k2, kb2 = jax.random.split(key, 5)

    N, C, H, W = 2, 4, 16, 16  # in_features = 4
    x = jax.random.normal(kx, (N, C, H, W), jnp.float32)
    # Deterministic synthetic parameters (HWIO layout), per nn.Conv2d(C, C, 3, 1, 1).
    w1 = jax.random.normal(k1, (3, 3, C, C), jnp.float32) * 0.1
    b1 = jax.random.normal(kb1, (C,), jnp.float32) * 0.1
    w2 = jax.random.normal(k2, (3, 3, C, C), jnp.float32) * 0.1
    b2 = jax.random.normal(kb2, (C,), jnp.float32) * 0.1

    out = residual_block(x, w1, b1, w2, b2)
    jax.block_until_ready(out)

    ref = ref_forward(x, w1, b1, w2, b2)
    assert out.shape == x.shape
    assert jnp.allclose(out, ref, atol=2e-2, rtol=2e-2), \
        float(jnp.max(jnp.abs(out - ref)))
    print("KERNEL_OK")
</pallas_src>

<mosaic_0001>
module attributes {stable_mosaic.version = 11 : i64} {
  func.func @residual_block_kernel(%arg0: i32, %arg1: memref<2x16x64xf32, #tpu.memory_space<vmem>>, %arg2: memref<192x64xbf16, #tpu.memory_space<vmem>>, %arg3: memref<1x64xf32, #tpu.memory_space<vmem>>, %arg4: memref<192x64xbf16, #tpu.memory_space<vmem>>, %arg5: memref<1x64xf32, #tpu.memory_space<vmem>>, %arg6: memref<2x16x64xf32, #tpu.memory_space<vmem>>, %arg7: memref<2x18x64xf32, #tpu.memory_space<vmem>>) attributes {dimension_semantics = [#tpu.dimension_semantics<parallel>], iteration_bounds = array<i64: 1>, scalar_prefetch = 0 : i64, scratch_operands = 1 : i64, tpu.core_type = #tpu.core_type<tc>, window_params = [{transform_indices = @transform_0, window_bounds = array<i64: 2, 16, 64>}, {pipeline_mode = #tpu.pipeline_mode<synchronous>, transform_indices = @transform_1, window_bounds = array<i64: 192, 64>}, {pipeline_mode = #tpu.pipeline_mode<synchronous>, transform_indices = @transform_2, window_bounds = array<i64: 1, 64>}, {pipeline_mode = #tpu.pipeline_mode<synchronous>, transform_indices = @transform_3, window_bounds = array<i64: 192, 64>}, {pipeline_mode = #tpu.pipeline_mode<synchronous>, transform_indices = @transform_4, window_bounds = array<i64: 1, 64>}, {transform_indices = @transform_5, window_bounds = array<i64: 2, 16, 64>}]} {
    %c0 = arith.constant 0 : index
    %c0_0 = arith.constant 0 : index
    %c0_1 = arith.constant 0 : index
    %0 = vector.load %arg1[%c0, %c0_0, %c0_1] : memref<2x16x64xf32, #tpu.memory_space<vmem>>, vector<2x16x64xf32>
    %cst = arith.constant 0.000000e+00 : f32
    %1 = vector.broadcast %cst : f32 to vector<2x1x64xf32>
    %c0_2 = arith.constant 0 : index
    %c0_3 = arith.constant 0 : index
    %c0_4 = arith.constant 0 : index
    %2 = vector.load %arg7[%c0_2, %c0_3, %c0_4] : memref<2x18x64xf32, #tpu.memory_space<vmem>>, vector<2x1x64xf32>
    tpu.vector_store %arg7[%c0_2, %c0_3, %c0_4], %1 {strides = array<i32>} : memref<2x18x64xf32, #tpu.memory_space<vmem>>, vector<2x1x64xf32>,
    %c0_5 = arith.constant 0 : index
    %c17 = arith.constant 17 : index
    %c0_6 = arith.constant 0 : index
    %3 = vector.load %arg7[%c0_5, %c17, %c0_6] : memref<2x18x64xf32, #tpu.memory_space<vmem>>, vector<2x1x64xf32>
    tpu.vector_store %arg7[%c0_5, %c17, %c0_6], %1 {strides = array<i32>} : memref<2x18x64xf32, #tpu.memory_space<vmem>>, vector<2x1x64xf32>,
    %c0_7 = arith.constant 0 : index
    %c1 = arith.constant 1 : index
    %c0_8 = arith.constant 0 : index
    %4 = vector.load %arg7[%c0_7, %c1, %c0_8] : memref<2x18x64xf32, #tpu.memory_space<vmem>>, vector<2x16x64xf32>
    tpu.vector_store %arg7[%c0_7, %c1, %c0_8], %0 {strides = array<i32>} : memref<2x18x64xf32, #tpu.memory_space<vmem>>, vector<2x16x64xf32>,
    %c0_9 = arith.constant 0 : index
    %c0_10 = arith.constant 0 : index
    %c0_11 = arith.constant 0 : index
    %5 = vector.load %arg7[%c0_9, %c0_10, %c0_11] : memref<2x18x64xf32, #tpu.memory_space<vmem>>, vector<2x16x64xf32>
    %c0_12 = arith.constant 0 : index
    %c1_13 = arith.constant 1 : index
    %c0_14 = arith.constant 0 : index
    %6 = vector.load %arg7[%c0_12, %c1_13, %c0_14] : memref<2x18x64xf32, #tpu.memory_space<vmem>>, vector<2x16x64xf32>
    %c0_15 = arith.constant 0 : index
    %c2 = arith.constant 2 : index
    %c0_16 = arith.constant 0 : index
    %7 = vector.load %arg7[%c0_15, %c2, %c0_16] : memref<2x18x64xf32, #tpu.memory_space<vmem>>, vector<2x16x64xf32>
    %8 = tpu.concatenate %5, %6, %7 in 2 : vector<2x16x64xf32>, vector<2x16x64xf32>, vector<2x16x64xf32> -> vector<2x16x192xf32>
    %9 = vector.shape_cast %8 : vector<2x16x192xf32> to vector<32x192xf32>
    %10 = arith.truncf %9 : vector<32x192xf32> to vector<32x192xbf16>
    %c0_17 = arith.constant 0 : index
    %c0_18 = arith.constant 0 : index
    %11 = vector.load %arg2[%c0_17, %c0_18] : memref<192x64xbf16, #tpu.memory_space<vmem>>, vector<192x64xbf16>
    %cst_19 = arith.constant dense<0.000000e+00> : vector<32x64xf32>
    %12 = tpu.matmul %10, %11, %cst_19 {dimension_numbers = #tpu.dot_dimension_numbers<[1], [0], [0], [1], [0, 0, 1, 1], [], []>} : vector<32x192xbf16>, vector<192x64xbf16>, vector<32x64xf32> -> vector<32x64xf32>
    %c0_20 = arith.constant 0 : index
    %c0_21 = arith.constant 0 : index
    %13 = vector.load %arg3[%c0_20, %c0_21] : memref<1x64xf32, #tpu.memory_space<vmem>>, vector<1x64xf32>
    %14 = vector.broadcast %13 : vector<1x64xf32> to vector<32x64xf32>
    %15 = arith.addf %12, %14 : vector<32x64xf32>
    %cst_22 = arith.constant 0.000000e+00 : f32
    %16 = vector.broadcast %cst_22 : f32 to vector<32x64xf32>
    %17 = arith.maximumf %15, %16 : vector<32x64xf32>
    %18 = vector.shape_cast %17 : vector<32x64xf32> to vector<2x16x64xf32>
    %c0_23 = arith.constant 0 : index
    %c1_24 = arith.constant 1 : index
    %c0_25 = arith.constant 0 : index
    %19 = vector.load %arg7[%c0_23, %c1_24, %c0_25] : memref<2x18x64xf32, #tpu.memory_space<vmem>>, vector<2x16x64xf32>
    tpu.vector_store %arg7[%c0_23, %c1_24, %c0_25], %18 {strides = array<i32>} : memref<2x18x64xf32, #tpu.memory_space<vmem>>, vector<2x16x64xf32>,
    %c0_26 = arith.constant 0 : index
    %c0_27 = arith.constant 0 : index
    %c0_28 = arith.constant 0 : index
    %20 = vector.load %arg7[%c0_26, %c0_27, %c0_28] : memref<2x18x64xf32, #tpu.memory_space<vmem>>, vector<2x16x64xf32>
    %c0_29 = arith.constant 0 : index
    %c1_30 = arith.constant 1 : index
    %c0_31 = arith.constant 0 : index
    %21 = vector.load %arg7[%c0_29, %c1_30, %c0_31] : memref<2x18x64xf32, #tpu.memory_space<vmem>>, vector<2x16x64xf32>
    %c0_32 = arith.constant 0 : index
    %c2_33 = arith.constant 2 : index
    %c0_34 = arith.constant 0 : index
    %22 = vector.load %arg7[%c0_32, %c2_33, %c0_34] : memref<2x18x64xf32, #tpu.memory_space<vmem>>, vector<2x16x64xf32>
    %23 = tpu.concatenate %20, %21, %22 in 2 : vector<2x16x64xf32>, vector<2x16x64xf32>, vector<2x16x64xf32> -> vector<2x16x192xf32>
    %24 = vector.shape_cast %23 : vector<2x16x192xf32> to vector<32x192xf32>
    %25 = arith.truncf %24 : vector<32x192xf32> to vector<32x192xbf16>
    %c0_35 = arith.constant 0 : index
    %c0_36 = arith.constant 0 : index
    %26 = vector.load %arg4[%c0_35, %c0_36] : memref<192x64xbf16, #tpu.memory_space<vmem>>, vector<192x64xbf16>
    %cst_37 = arith.constant dense<0.000000e+00> : vector<32x64xf32>
    %27 = tpu.matmul %25, %26, %cst_37 {dimension_numbers = #tpu.dot_dimension_numbers<[1], [0], [0], [1], [0, 0, 1, 1], [], []>} : vector<32x192xbf16>, vector<192x64xbf16>, vector<32x64xf32> -> vector<32x64xf32>
    %c0_38 = arith.constant 0 : index
    %c0_39 = arith.constant 0 : index
    %28 = vector.load %arg5[%c0_38, %c0_39] : memref<1x64xf32, #tpu.memory_space<vmem>>, vector<1x64xf32>
    %29 = vector.broadcast %28 : vector<1x64xf32> to vector<32x64xf32>
    %30 = arith.addf %27, %29 : vector<32x64xf32>
    %31 = vector.shape_cast %30 : vector<32x64xf32> to vector<2x16x64xf32>
    %32 = arith.addf %0, %31 : vector<2x16x64xf32>
    %c0_40 = arith.constant 0 : index
    %c0_41 = arith.constant 0 : index
    %c0_42 = arith.constant 0 : index
    %33 = vector.load %arg6[%c0_40, %c0_41, %c0_42] : memref<2x16x64xf32, #tpu.memory_space<vmem>>, vector<2x16x64xf32>
    tpu.vector_store %arg6[%c0_40, %c0_41, %c0_42], %32 {strides = array<i32>} : memref<2x16x64xf32, #tpu.memory_space<vmem>>, vector<2x16x64xf32>,
    return
  }
  func.func @transform_0(%arg0: i32) -> (i32, i32, i32) {
    %c0_i32 = arith.constant 0 : i32
    %c0_i32_0 = arith.constant 0 : i32
    %c0_i32_1 = arith.constant 0 : i32
    return %arg0, %c0_i32, %c0_i32_0 : i32, i32, i32
  }
  func.func @transform_1(%arg0: i32) -> (i32, i32) {
    %c0_i32 = arith.constant 0 : i32
    %c0_i32_0 = arith.constant 0 : i32
    %c0_i32_1 = arith.constant 0 : i32
    return %c0_i32, %c0_i32_0 : i32, i32
  }
  func.func @transform_2(%arg0: i32) -> (i32, i32) {
    %c0_i32 = arith.constant 0 : i32
    %c0_i32_0 = arith.constant 0 : i32
    %c0_i32_1 = arith.constant 0 : i32
    return %c0_i32, %c0_i32_0 : i32, i32
  }
  func.func @transform_3(%arg0: i32) -> (i32, i32) {
    %c0_i32 = arith.constant 0 : i32
    %c0_i32_0 = arith.constant 0 : i32
    %c0_i32_1 = arith.constant 0 : i32
    return %c0_i32, %c0_i32_0 : i32, i32
  }
  func.func @transform_4(%arg0: i32) -> (i32, i32) {
    %c0_i32 = arith.constant 0 : i32
    %c0_i32_0 = arith.constant 0 : i32
    %c0_i32_1 = arith.constant 0 : i32
    return %c0_i32, %c0_i32_0 : i32, i32
  }
  func.func @transform_5(%arg0: i32) -> (i32, i32, i32) {
    %c0_i32 = arith.constant 0 : i32
    %c0_i32_0 = arith.constant 0 : i32
    %c0_i32_1 = arith.constant 0 : i32
    return %arg0, %c0_i32, %c0_i32_0 : i32, i32, i32
  }
}

</mosaic_0001>

<llo_original>
// kernel: tpu_custom_call.1
$region0: #{tpu_custom_call.1}
  #allocation0 [shape = 'u32[]', space=smem, size = 0x4, offset = 0x4, fixed_abs, tag = 'smem constant byte address 0x4 - core index']
  #allocation1 [shape = 'u32[144,128]{1,0:T(1,128)}', space=vmem, size = 0x12000, scoped, tag = 'internal scratch']
  #allocation2 [shape = 'f32[2,18,64]{2,1,0:T(8,128)}', space=vmem, size = 0x6000, scoped, tag = 'scratch operand']
  %s0 = inlined_call_operand.vmem [shape: f32[2,16,64], index: 0, kind: input, shape index: {}]
  %s1 = inlined_call_operand.vmem [shape: bf16[192,64], index: 1, kind: input, shape index: {}]
  %s2 = inlined_call_operand.vmem [shape: f32[1,64], index: 2, kind: input, shape index: {}]
  %s3 = inlined_call_operand.vmem [shape: bf16[192,64], index: 3, kind: input, shape index: {}]
  %s4 = inlined_call_operand.vmem [shape: f32[1,64], index: 4, kind: input, shape index: {}]
  %s5 = inlined_call_operand.hbm [shape: f32[2,16,64], index: 5, kind: output, shape index: {}]
  %s6 = sld [smem:[#allocation0]]
  $region30: #{tpu_custom_call.1} parent=0
    _
  %s8 = ssub.s32 1, %s6
  %s9 = scalar_select 0, %s8, %s6
  $region1: #{tpu_custom_call.1} parent=0
    #allocation3 [shape = 'u8[16384]{0}', space=vmem, size = 0x4000, scoped, tag = 'output window, operand 0, single buffered']
    #allocation4 [shape = 's32[1]{0}', space=sflag, size = 0x4, scoped, tag = 'scoped memory for tpu_custom_call.1']
    %10 = vsyncpa [#allocation4], 0
    // Predicated region
    $region2: #{tpu_custom_call.1} parent=1 // pred_check
      _
    $region3: #{tpu_custom_call.1} parent=1 // pred_check_branch
      %12 = sbr.rel (0) target = $region5
    $region4: #{tpu_custom_call.1} parent=1 // pred_region
      _
    $region5: #{tpu_custom_call.1} parent=1 // pred_fallthru
      _
    // Predicated region
    $region6: #{tpu_custom_call.1} parent=1 // pred_check
      _
    $region7: #{tpu_custom_call.1} parent=1 // pred_check_branch
      %14 = sbr.rel (0) target = $region9
    $region8: #{tpu_custom_call.1} parent=1 // pred_region
      _
    $region9: #{tpu_custom_call.1} parent=1 // pred_fallthru
      _
    // Predicated region
    $region10: #{tpu_custom_call.1} parent=1 // pred_check
      _
    $region11: #{tpu_custom_call.1} parent=1 // pred_check_branch
      %16 = sbr.rel (0) target = $region13
    $region12: #{tpu_custom_call.1} parent=1 // pred_region
      _
    $region13: #{tpu_custom_call.1} parent=1 // pred_fallthru
      _
    // Predicated region
    $region14: #{tpu_custom_call.1} parent=1 // pred_check
      _
    $region15: #{tpu_custom_call.1} parent=1 // pred_check_branch
      %18 = sbr.rel (0) target = $region17
    $region16: #{tpu_custom_call.1} parent=1 // pred_region
      _
    $region17: #{tpu_custom_call.1} parent=1 // pred_fallthru
      _
    // Predicated region
    $region18: #{tpu_custom_call.1} parent=1 // pred_check
      _
    $region19: #{tpu_custom_call.1} parent=1 // pred_check_branch
      %20 = sbr.rel (0) target = $region21
    $region20: #{tpu_custom_call.1} parent=1 // pred_region
      _
    $region21: #{tpu_custom_call.1} parent=1 // pred_fallthru
      _
    %v22 = vld [vmem:[%s0] sm:$0xff]
    %v23 = vld [vmem:[%s0 + $0x8] sm:$0xff]
    %v24 = vld [vmem:[%s0 + $0x10] sm:$0xff]
    %v25 = vld [vmem:[%s0 + $0x18] sm:$0xff]
    %vm26 = vcmask 516096
    %27 = vst.msk [vmem:[#allocation2] sm:$0x1] %vm26, 0.0
    %28 = vst.msk [vmem:[#allocation2 + $0x18] sm:$0x1] %vm26, 0.0
    %29 = vst.msk [vmem:[#allocation2 + $0x11] sm:$0x1] %vm26, 0.0
    %30 = vst.msk [vmem:[#allocation2 + $0x29] sm:$0x1] %vm26, 0.0
    %vm31 = vcmask 523264
    %32 = vst.msk [vmem:[#allocation2 + $0x1] sm:$0xff] %vm31, %v22
    %33 = vst.msk [vmem:[#allocation2 + $0x9] sm:$0xff] %vm31, %v23
    %34 = vst.msk [vmem:[#allocation2 + $0x19] sm:$0xff] %vm31, %v24
    %35 = vst.msk [vmem:[#allocation2 + $0x21] sm:$0xff] %vm31, %v25
    %v36 = vld [vmem:[#allocation2] sm:$0xff]
    %v37 = vld [vmem:[#allocation2 + $0x8] sm:$0xff]
    %v38 = vld [vmem:[#allocation2 + $0x18] sm:$0xff]
    %v39 = vld [vmem:[#allocation2 + $0x20] sm:$0xff]
    %v40 = vld [vmem:[#allocation2 + $0x1] sm:$0xff]
    %v41 = vld [vmem:[#allocation2 + $0x9] sm:$0xff]
    %v42 = vld [vmem:[#allocation2 + $0x19] sm:$0xff]
    %v43 = vld [vmem:[#allocation2 + $0x21] sm:$0xff]
    %v44 = vld [vmem:[#allocation2 + $0x2] sm:$0xff]
    %v45 = vld [vmem:[#allocation2 + $0xa] sm:$0xff]
    %v46 = vld [vmem:[#allocation2 + $0x1a] sm:$0xff]
    %v47 = vld [vmem:[#allocation2 + $0x22] sm:$0xff]
    %52 = vrot.lane.b32.xlu0 %v40, 64
    %v53 = vpop.permute.xlu0 %52
    %54 = vrot.lane.b32.xlu0 %v41, 64
    %v55 = vpop.permute.xlu0 %54
    %56 = vrot.lane.b32.xlu0 %v42, 64
    %v57 = vpop.permute.xlu0 %56
    %58 = vrot.lane.b32.xlu0 %v43, 64
    %v59 = vpop.permute.xlu0 %58
    %v64 = vsel %vm31, %v36, %v53
    %v65 = vsel %vm31, %v37, %v55
    %v66 = vsel %vm31, %v38, %v57
    %v67 = vsel %vm31, %v39, %v59
    %v68 = vpack.c.bf16 %v65, %v64
    %v69 = vpack.c.bf16 %v45, %v44
    %v70 = vpack.c.bf16 %v67, %v66
    %v71 = vpack.c.bf16 %v47, %v46
    %v72 = vld [vmem:[%s1] sm:$0xf]
    %v73 = vld [vmem:[%s1 + $0x4] sm:$0xf]
    %v74 = vld [vmem:[%s1 + $0x8] sm:$0xf]
    %v75 = vld [vmem:[%s1 + $0xc] sm:$0xf]
    %v76 = vld [vmem:[%s1 + $0x10] sm:$0xf]
    %v77 = vld [vmem:[%s1 + $0x14] sm:$0xf]
    %v78 = vld [vmem:[%s1 + $0x18] sm:$0xf]
    %v79 = vld [vmem:[%s1 + $0x1c] sm:$0xf]
    %v80 = vld [vmem:[%s1 + $0x20] sm:$0xf]
    %v81 = vld [vmem:[%s1 + $0x24] sm:$0xf]
    %v82 = vld [vmem:[%s1 + $0x28] sm:$0xf]
    %v83 = vld [vmem:[%s1 + $0x2c] sm:$0xf]
    %v84 = vld [vmem:[%s1 + $0x30] sm:$0xf]
    %v85 = vld [vmem:[%s1 + $0x34] sm:$0xf]
    %v86 = vld [vmem:[%s1 + $0x38] sm:$0xf]
    %v87 = vld [vmem:[%s1 + $0x3c] sm:$0xf]
    %v88 = vld [vmem:[%s1 + $0x40] sm:$0xf]
    %v89 = vld [vmem:[%s1 + $0x44] sm:$0xf]
    %v90 = vld [vmem:[%s1 + $0x48] sm:$0xf]
    %v91 = vld [vmem:[%s1 + $0x4c] sm:$0xf]
    %v92 = vld [vmem:[%s1 + $0x50] sm:$0xf]
    %v93 = vld [vmem:[%s1 + $0x54] sm:$0xf]
    %v94 = vld [vmem:[%s1 + $0x58] sm:$0xf]
    %v95 = vld [vmem:[%s1 + $0x5c] sm:$0xf]
    %v96 = vld [vmem:[%s2] sm:$0x1]
    %v98 = vlaneseq
    %v99 = vshrl.u32 %v98, 7
    %v100 = vsub.s32 0, %v99
    %v101 = vrot.slane %v96, %v100
    %v127 = vunpack.c.l.b16 %v72
    %v128 = vunpack.c.l.b16 %v73
    %v129 = vunpack.c.l.b16 %v74
    %v130 = vunpack.c.l.b16 %v75
    %v131 = vunpack.c.l.b16 %v76
    %v132 = vunpack.c.l.b16 %v77
    %v133 = vunpack.c.l.b16 %v78
    %v134 = vunpack.c.l.b16 %v79
    %v135 = vunpack.c.l.b16 %v80
    %v136 = vunpack.c.l.b16 %v81
    %v137 = vunpack.c.l.b16 %v82
    %v138 = vunpack.c.l.b16 %v83
    %v139 = vunpack.c.l.b16 %v84
    %v140 = vunpack.c.l.b16 %v85
    %v141 = vunpack.c.l.b16 %v86
    %v142 = vunpack.c.l.b16 %v87
    %v143 = vunpack.c.l.b16 %v88
    %v144 = vunpack.c.l.b16 %v89
    %v145 = vunpack.c.l.b16 %v90
    %v146 = vunpack.c.l.b16 %v91
    %v147 = vunpack.c.l.b16 %v92
    %v148 = vunpack.c.l.b16 %v93
    %v149 = vunpack.c.l.b16 %v94
    %v150 = vunpack.c.l.b16 %v95
    %v151 = vpack.c.b16 %v128, %v127
    %v152 = vpack.c.b16 %v130, %v129
    %v153 = vpack.c.b16 %v132, %v131
    %v154 = vpack.c.b16 %v134, %v133
    %v155 = vpack.c.b16 %v136, %v135
    %v156 = vpack.c.b16 %v138, %v137
    %v157 = vpack.c.b16 %v140, %v139
    %v158 = vpack.c.b16 %v142, %v141
    %v159 = vpack.c.b16 %v144, %v143
    %v160 = vpack.c.b16 %v146, %v145
    %v161 = vpack.c.b16 %v148, %v147
    %v162 = vpack.c.b16 %v150, %v149
    %v176 = vsel %vm31, %v69, 0
    %v179 = vsel %vm31, %v71, 0
    %181 = vmatprep.subr.bf16.mxu0 0
    %182 = vmatpush1.bf16.msra.mxu0 %v151
    %183 = vmatprep.subr.bf16.mxu0 0
    %184 = vmatpush1.bf16.msra.mxu0 %v152
    %185 = vmatprep.subr.bf16.mxu0 0
    %186 = vmatpush1.bf16.msra.mxu0 %v153
    %187 = vmatprep.subr.bf16.mxu0 0
    %188 = vmatpush1.bf16.msra.mxu0 %v154
    %189 = vmatprep.subr.bf16.mxu0 0
    %190 = vmatpush1.bf16.msra.mxu0 %v155
    %191 = vmatprep.subr.bf16.mxu0 0
    %192 = vmatpush1.bf16.msra.mxu0 %v156
    %193 = vmatprep.subr.bf16.mxu0 0
    %194 = vmatpush1.bf16.msra.mxu0 %v157
    %195 = vmatprep.subr.bf16.mxu0 0
    %196 = vmatpush1.bf16.msra.mxu0 %v158
    %197 = vmatprep.subr.bf16.mxu0 0
    %198 = vmatpush1.bf16.msra.mxu0 %v159
    %199 = vmatprep.subr.bf16.mxu0 0
    %200 = vmatpush1.bf16.msra.mxu0 %v160
    %201 = vmatprep.subr.bf16.mxu0 0
    %202 = vmatpush1.bf16.msra.mxu0 %v161
    %203 = vmatprep.subr.bf16.mxu0 0
    %204 = vmatpush1.bf16.msra.mxu0 %v162
    %205 = vmatprep.subr.bf16.mxu0 0
    %206 = vmatpush1.bf16.msra.mxu0 0
    %207 = vmatprep.subr.bf16.mxu0 0
    %208 = vmatpush1.bf16.msra.mxu0 0
    %209 = vmatprep.subr.bf16.mxu0 0
    %210 = vmatpush1.bf16.msra.mxu0 0
    %211 = vmatprep.subr.bf16.mxu0 0
    %212 = vmatpush1.bf16.msra.mxu0 0
    %213 = vmatprep.mubr.bf16.mxu0 %v176
    %214 = vmatmul.mubr.bf16.gmra.mrb[0].mxu0 %v68
    %v215 = vpop.f32.mrb[0].mxu0
    %v216 = vadd.f32 %v101, %v215
    %v217 = vpop.f32.mrb[0].mxu0
    %v218 = vpop.f32.mrb[0].mxu0
    %v219 = vadd.f32 %v101, %v218
    %v220 = vpop.f32.mrb[0].mxu0
    %221 = vmatprep.mubr.bf16.mxu0 %v179
    %222 = vmatmul.mubr.bf16.gmra.mrb[0].mxu0 %v70
    %v223 = vpop.f32.mrb[0].mxu0
    %v224 = vadd.f32 %v101, %v223
    %v225 = vpop.f32.mrb[0].mxu0
    %v226 = vpop.f32.mrb[0].mxu0
    %v227 = vadd.f32 %v101, %v226
    %v228 = vpop.f32.mrb[0].mxu0
    %229 = vdwg.mxu0
    %v230 = vmax.f32 %v216, 0.0
    %v231 = vmax.f32 %v219, 0.0
    %v232 = vmax.f32 %v224, 0.0
    %v233 = vmax.f32 %v227, 0.0
    %234 = vst.msk [vmem:[#allocation2 + $0x1] sm:$0xff] %vm31, %v230
    %235 = vst.msk [vmem:[#allocation2 + $0x9] sm:$0xff] %vm31, %v231
    %236 = vst.msk [vmem:[#allocation2 + $0x19] sm:$0xff] %vm31, %v232
    %237 = vst.msk [vmem:[#allocation2 + $0x21] sm:$0xff] %vm31, %v233
    %v238 = vld [vmem:[#allocation2] sm:$0xff]
    %v239 = vld [vmem:[#allocation2 + $0x8] sm:$0xff]
    %v240 = vld [vmem:[#allocation2 + $0x18] sm:$0xff]
    %v241 = vld [vmem:[#allocation2 + $0x20] sm:$0xff]
    %v242 = vld [vmem:[#allocation2 + $0x1] sm:$0xff]
    %v243 = vld [vmem:[#allocation2 + $0x9] sm:$0xff]
    %v244 = vld [vmem:[#allocation2 + $0x19] sm:$0xff]
    %v245 = vld [vmem:[#allocation2 + $0x21] sm:$0xff]
    %v246 = vld [vmem:[#allocation2 + $0x2] sm:$0xff]
    %v247 = vld [vmem:[#allocation2 + $0xa] sm:$0xff]
    %v248 = vld [vmem:[#allocation2 + $0x1a] sm:$0xff]
    %v249 = vld [vmem:[#allocation2 + $0x22] sm:$0xff]
    %254 = vrot.lane.b32.xlu0 %v242, 64
    %v255 = vpop.permute.xlu0 %254
    %256 = vrot.lane.b32.xlu0 %v243, 64
    %v257 = vpop.permute.xlu0 %256
    %258 = vrot.lane.b32.xlu0 %v244, 64
    %v259 = vpop.permute.xlu0 %258
    %260 = vrot.lane.b32.xlu0 %v245, 64
    %v261 = vpop.permute.xlu0 %260
    %v266 = vsel %vm31, %v238, %v255
    %v267 = vsel %vm31, %v239, %v257
    %v268 = vsel %vm31, %v240, %v259
    %v269 = vsel %vm31, %v241, %v261
    %v270 = vpack.c.bf16 %v267, %v266
    %v271 = vpack.c.bf16 %v247, %v246
    %v272 = vpack.c.bf16 %v269, %v268
    %v273 = vpack.c.bf16 %v249, %v248
    %v274 = vld [vmem:[%s3] sm:$0xf]
    %v275 = vld [vmem:[%s3 + $0x4] sm:$0xf]
    %v276 = vld [vmem:[%s3 + $0x8] sm:$0xf]
    %v277 = vld [vmem:[%s3 + $0xc] sm:$0xf]
    %v278 = vld [vmem:[%s3 + $0x10] sm:$0xf]
    %v279 = vld [vmem:[%s3 + $0x14] sm:$0xf]
    %v280 = vld [vmem:[%s3 + $0x18] sm:$0xf]
    %v281 = vld [vmem:[%s3 + $0x1c] sm:$0xf]
    %v282 = vld [vmem:[%s3 + $0x20] sm:$0xf]
    %v283 = vld [vmem:[%s3 + $0x24] sm:$0xf]
    %v284 = vld [vmem:[%s3 + $0x28] sm:$0xf]
    %v285 = vld [vmem:[%s3 + $0x2c] sm:$0xf]
    %v286 = vld [vmem:[%s3 + $0x30] sm:$0xf]
    %v287 = vld [vmem:[%s3 + $0x34] sm:$0xf]
    %v288 = vld [vmem:[%s3 + $0x38] sm:$0xf]
    %v289 = vld [vmem:[%s3 + $0x3c] sm:$0xf]
    %v290 = vld [vmem:[%s3 + $0x40] sm:$0xf]
    %v291 = vld [vmem:[%s3 + $0x44] sm:$0xf]
    %v292 = vld [vmem:[%s3 + $0x48] sm:$0xf]
    %v293 = vld [vmem:[%s3 + $0x4c] sm:$0xf]
    %v294 = vld [vmem:[%s3 + $0x50] sm:$0xf]
    %v295 = vld [vmem:[%s3 + $0x54] sm:$0xf]
    %v296 = vld [vmem:[%s3 + $0x58] sm:$0xf]
    %v297 = vld [vmem:[%s3 + $0x5c] sm:$0xf]
    %v298 = vld [vmem:[%s4] sm:$0x1]
    %v300 = vlaneseq
    %v301 = vshrl.u32 %v300, 7
    %v302 = vsub.s32 0, %v301
    %v303 = vrot.slane %v298, %v302
    %v329 = vunpack.c.l.b16 %v274
    %v330 = vunpack.c.l.b16 %v275
    %v331 = vunpack.c.l.b16 %v276
    %v332 = vunpack.c.l.b16 %v277
    %v333 = vunpack.c.l.b16 %v278
    %v334 = vunpack.c.l.b16 %v279
    %v335 = vunpack.c.l.b16 %v280
    %v336 = vunpack.c.l.b16 %v281
    %v337 = vunpack.c.l.b16 %v282
    %v338 = vunpack.c.l.b16 %v283
    %v339 = vunpack.c.l.b16 %v284
    %v340 = vunpack.c.l.b16 %v285
    %v341 = vunpack.c.l.b16 %v286
    %v342 = vunpack.c.l.b16 %v287
    %v343 = vunpack.c.l.b16 %v288
    %v344 = vunpack.c.l.b16 %v289
    %v345 = vunpack.c.l.b16 %v290
    %v346 = vunpack.c.l.b16 %v291
    %v347 = vunpack.c.l.b16 %v292
    %v348 = vunpack.c.l.b16 %v293
    %v349 = vunpack.c.l.b16 %v294
    %v350 = vunpack.c.l.b16 %v295
    %v351 = vunpack.c.l.b16 %v296
    %v352 = vunpack.c.l.b16 %v297
    %v353 = vpack.c.b16 %v330, %v329
    %v354 = vpack.c.b16 %v332, %v331
    %v355 = vpack.c.b16 %v334, %v333
    %v356 = vpack.c.b16 %v336, %v335
    %v357 = vpack.c.b16 %v338, %v337
    %v358 = vpack.c.b16 %v340, %v339
    %v359 = vpack.c.b16 %v342, %v341
    %v360 = vpack.c.b16 %v344, %v343
    %v361 = vpack.c.b16 %v346, %v345
    %v362 = vpack.c.b16 %v348, %v347
    %v363 = vpack.c.b16 %v350, %v349
    %v364 = vpack.c.b16 %v352, %v351
    %v378 = vsel %vm31, %v271, 0
    %v381 = vsel %vm31, %v273, 0
    %383 = vmatprep.subr.bf16.mxu0 0
    %384 = vmatpush1.bf16.msra.mxu0 %v353
    %385 = vmatprep.subr.bf16.mxu0 0
    %386 = vmatpush1.bf16.msra.mxu0 %v354
    %387 = vmatprep.subr.bf16.mxu0 0
    %388 = vmatpush1.bf16.msra.mxu0 %v355
    %389 = vmatprep.subr.bf16.mxu0 0
    %390 = vmatpush1.bf16.msra.mxu0 %v356
    %391 = vmatprep.subr.bf16.mxu0 0
    %392 = vmatpush1.bf16.msra.mxu0 %v357
    %393 = vmatprep.subr.bf16.mxu0 0
    %394 = vmatpush1.bf16.msra.mxu0 %v358
    %395 = vmatprep.subr.bf16.mxu0 0
    %396 = vmatpush1.bf16.msra.mxu0 %v359
    %397 = vmatprep.subr.bf16.mxu0 0
    %398 = vmatpush1.bf16.msra.mxu0 %v360
    %399 = vmatprep.subr.bf16.mxu0 0
    %400 = vmatpush1.bf16.msra.mxu0 %v361
    %401 = vmatprep.subr.bf16.mxu0 0
    %402 = vmatpush1.bf16.msra.mxu0 %v362
    %403 = vmatprep.subr.bf16.mxu0 0
    %404 = vmatpush1.bf16.msra.mxu0 %v363
    %405 = vmatprep.subr.bf16.mxu0 0
    %406 = vmatpush1.bf16.msra.mxu0 %v364
    %407 = vmatprep.subr.bf16.mxu0 0
    %408 = vmatpush1.bf16.msra.mxu0 0
    %409 = vmatprep.subr.bf16.mxu0 0
    %410 = vmatpush1.bf16.msra.mxu0 0
    %411 = vmatprep.subr.bf16.mxu0 0
    %412 = vmatpush1.bf16.msra.mxu0 0
    %413 = vmatprep.subr.bf16.mxu0 0
    %414 = vmatpush1.bf16.msra.mxu0 0
    %415 = vmatprep.mubr.bf16.mxu0 %v378
    %416 = vmatmul.mubr.bf16.gmra.mrb[0].mxu0 %v270
    %v417 = vpop.f32.mrb[0].mxu0
    %v418 = vadd.f32 %v303, %v417
    %v419 = vpop.f32.mrb[0].mxu0
    %v420 = vpop.f32.mrb[0].mxu0
    %v421 = vadd.f32 %v303, %v420
    %v422 = vpop.f32.mrb[0].mxu0
    %423 = vmatprep.mubr.bf16.mxu0 %v381
    %424 = vmatmul.mubr.bf16.gmra.mrb[0].mxu0 %v272
    %v425 = vpop.f32.mrb[0].mxu0
    %v426 = vadd.f32 %v303, %v425
    %v427 = vpop.f32.mrb[0].mxu0
    %v428 = vpop.f32.mrb[0].mxu0
    %v429 = vadd.f32 %v303, %v428
    %v430 = vpop.f32.mrb[0].mxu0
    %431 = vdwg.mxu0
    %v432 = vadd.f32 %v22, %v418
    %v433 = vadd.f32 %v23, %v421
    %v434 = vadd.f32 %v24, %v426
    %v435 = vadd.f32 %v25, %v429
    %436 = vst.msk [vmem:[#allocation3] sm:$0xff] %vm31, %v432
    %437 = vst.msk [vmem:[#allocation3 + $0x8] sm:$0xff] %vm31, %v433
    %438 = vst.msk [vmem:[#allocation3 + $0x10] sm:$0xff] %vm31, %v434
    %439 = vst.msk [vmem:[#allocation3 + $0x18] sm:$0xff] %vm31, %v435
    // Predicated region
    $region22: #{tpu_custom_call.1} parent=1 // pred_check
      _
    $region23: #{tpu_custom_call.1} parent=1 // pred_check_branch
      %441 = sbr.rel (0) target = $region25
    $region24: #{tpu_custom_call.1} parent=1 // pred_region
      %s443 = ssub.s32 512, 512
      %444 = vsyncadd [#allocation4], %s443
      %s445 = sshll.u32 [#allocation3], 4
      %s446 = int_to_ptr.vmem [resolvable:$true] %s445
      %451 = dma.vmem_to_hbm [thread:$0]  %s446, 512, %s5, [#allocation4], 128, 128, 8
    $region25: #{tpu_custom_call.1} parent=1 // pred_fallthru
      _
    // Predicated region
    $region26: #{tpu_custom_call.1} parent=1 // pred_check
      _
    $region27: #{tpu_custom_call.1} parent=1 // pred_check_branch
      %453 = sbr.rel (0) target = $region29
    $region28: #{tpu_custom_call.1} parent=1 // pred_region
      %454 = dma.done [#allocation4], 512
    $region29: #{tpu_custom_call.1} parent=1 // pred_fallthru
      _
    %455 = vsyncpa [#allocation4], 1

</llo_original>
